<compile_context>
chip_gen: v5e
topology: v5e:2x2
jax: 0.10.0
libtpu: 0.0.40
codegen_flags: <defaults>
</compile_context>

<pallas_src>
import jax
import jax.numpy as jnp
from jax.experimental import pallas as pl
from jax.experimental.pallas import tpu as pltpu


def _cdiv(a, b):
    return -(-a // b)


def _round_up(x, m):
    return _cdiv(x, m) * m


def _balanced_tile(dim, target, gran):
    """Tile size (multiple of `gran`, <= ~target) for an extent `dim`.

    Prefers a tile that divides the gran-padded extent exactly (so jnp.pad is
    a no-op for that operand) as long as it stays >= half of the balanced
    split, otherwise keeps padding waste to roughly one granularity unit.
    """
    dim_p = _round_up(max(dim, 1), gran)
    if dim_p <= target:
        return dim_p
    n_blocks = _cdiv(dim_p, target)
    tile = _round_up(_cdiv(dim_p, n_blocks), gran)
    units = dim_p // gran
    lo = max(tile // (2 * gran), 1)
    for cand in range(tile // gran, lo - 1, -1):
        if units % cand == 0:
            return cand * gran
    return tile


def _vmem_bytes(bm, bn, bk, cs, os_, multi_k, w_bufs):
    """Double-buffered tile footprint (bytes) of the pipelined kernel."""
    b = 2 * bm * bk * cs          # x tiles
    b += w_bufs * bk * bn * cs    # weight tiles
    b += 2 * bn * 4               # bias tiles (f32)
    b += 2 * bm * bn * os_        # output tiles
    if multi_k:
        b += bm * bn * 4          # f32 accumulator scratch
    return b


# ---------------------------------------------------------------------------
# Kernels
# ---------------------------------------------------------------------------

def _linear_bias_kernel(x_ref, w_ref, b_ref, o_ref):
    """Single K step: whole K panel resident -> one MXU pass per output tile."""
    acc = jnp.dot(x_ref[...], w_ref[...], preferred_element_type=jnp.float32)
    o_ref[...] = (acc + b_ref[...]).astype(o_ref.dtype)


def _linear_bias_acc_kernel(x_ref, w_ref, b_ref, o_ref, acc_ref):
    """Tiled K: accumulate in f32 VMEM scratch, bias-add + cast at the end."""
    k = pl.program_id(2)

    @pl.when(k == 0)
    def _zero():
        acc_ref[...] = jnp.zeros_like(acc_ref)

    acc_ref[...] += jnp.dot(x_ref[...], w_ref[...],
                            preferred_element_type=jnp.float32)

    @pl.when(k == pl.num_programs(2) - 1)
    def _finish():
        o_ref[...] = (acc_ref[...] + b_ref[...]).astype(o_ref.dtype)


# ---------------------------------------------------------------------------
# Wrapper
# ---------------------------------------------------------------------------

def normal_unit_variance_layer(x, weight, bias, *, block_m=None, block_n=None,
                               block_k=None, compute_dtype=jnp.bfloat16,
                               out_dtype=None, force_pallas=False):
    """Pallas implementation of NormalDistributionUnitVarianceLayer.forward
    with a dense (nn.Linear) transform.

    Args:
      x:      [B, in_features]
      weight: [in_features, out_features]   (nn.Linear.weight.T layout)
      bias:   [out_features]
      compute_dtype: operand dtype for the MXU (default bf16; accumulation
        stays f32). Pass jnp.float32 for bit-tight results, or None to keep
        the input dtypes.
      force_pallas: skip the tiny-problem XLA fallback (used in tests).

    Returns:
      (loc, scale): loc is [B, out_features]; scale is the scalar 1.0
      (unit-variance Normal).
    """
    B, K = x.shape
    Kw, N = weight.shape
    assert Kw == K, (Kw, K)
    assert bias.shape == (N,), bias.shape

    out_dtype = out_dtype or x.dtype

    # --- tiny-problem fast path -------------------------------------------
    # Pad + pallas launch + slice overhead dominates sub-microsecond matmuls;
    # XLA's fused dot is strictly faster there on every TPU generation.
    padded_macs = _round_up(B, 8) * _round_up(N, 128) * _round_up(K, 128)
    if not force_pallas and padded_macs <= 16 * 128 * 128 * 128:
        loc = (jnp.dot(x, weight, preferred_element_type=jnp.float32)
               + bias.astype(jnp.float32)).astype(out_dtype)
        return loc, jnp.float32(1.0)

    # --- compute dtype ------------------------------------------------------
    if compute_dtype is not None:
        if x.dtype != compute_dtype:
            x = x.astype(compute_dtype)
        if weight.dtype != compute_dtype:
            weight = weight.astype(compute_dtype)
    cs = jnp.dtype(x.dtype).itemsize
    os_ = jnp.dtype(out_dtype).itemsize
    # Sublane packing granularity: 32 for int8/fp8, 16 for bf16/f16, 8 for f32.
    sublane = {1: 32, 2: 16, 4: 8}.get(cs, 8)

    # --- generation-aware VMEM budget ---------------------------------------
    try:
        vmem_cap = int(pltpu.get_tpu_info().vmem_capacity_bytes)
    except Exception:
        vmem_cap = 64 * 1024 * 1024  # conservative: v7x per-TC capacity
    budget = int(0.6 * vmem_cap)

    # --- tile selection ------------------------------------------------------
    bm = (_round_up(block_m, sublane) if block_m is not None
          else _balanced_tile(B, 512, sublane))
    bn = (_round_up(block_n, 128) if block_n is not None
          else _balanced_tile(N, 512, 128))

    # v7x has 2 TensorCores: make sure at least one "parallel" axis has >= 2
    # blocks so both cores get work (no-op on v5e/v6e beyond slightly smaller
    # tiles, and only when the batch fits a single M block).
    Mp = _round_up(B, bm)
    if block_n is None and Mp // bm == 1:
        Np0 = _round_up(N, 128)
        if Np0 // bn < 2 and Np0 >= 256:
            bn = _round_up(_cdiv(Np0, 2), 128)

    Kp_full = _round_up(K, 128)
    if block_k is not None:
        bk = _round_up(block_k, 128)
        # v5e guard: tiny K tiles turn the (bm,bn) f32 accumulator RMW into
        # the saturated slot (1 vst/cycle); keep bk >= 256 for large tiles.
        if bk < 256 and bm * bn >= 128 * 512 and Kp_full >= 256:
            bk = 256
    else:
        # Collapse the K grid axis when the whole K panel fits in VMEM:
        # removes the accumulator RMW and the per-k re-DMA of x tiles.
        if _vmem_bytes(bm, bn, Kp_full, cs, os_, False, 2) <= budget:
            bk = Kp_full
        else:
            bk = _balanced_tile(K, 512, 128)

    def _needed(bm_, bn_, bk_):
        multi = _round_up(K, bk_) > bk_
        # Deeper weight pipeline hides the W DMA behind short matmuls when
        # M is skinny (most useful on v5e's lower HBM bandwidth).
        w_bufs = 3 if (multi and bm_ <= 64) else 2
        return _vmem_bytes(bm_, bn_, bk_, cs, os_, multi, w_bufs), w_bufs, multi

    vmem_needed, w_bufs, multi_k = _needed(bm, bn, bk)
    # Shrink tiles until the double-buffered footprint fits the budget
    # (guards user-supplied blocks on v7x's 64 MiB/TC VMEM).
    while vmem_needed > budget:
        if bk > 256:
            bk = max(256, _round_up(bk // 2, 128))
        elif bn > 128:
            bn = max(128, _round_up(bn // 2, 128))
        elif bm > sublane:
            bm = max(sublane, _round_up(bm // 2, sublane))
        else:
            break
        vmem_needed, w_bufs, multi_k = _needed(bm, bn, bk)

    # --- padding (only when actually needed; weight is usually left alone) --
    Mp, Kp, Np = _round_up(B, bm), _round_up(K, bk), _round_up(N, bn)
    xp = x if (Mp == B and Kp == K) else jnp.pad(x, ((0, Mp - B), (0, Kp - K)))
    wp = (weight if (Kp == K and Np == N)
          else jnp.pad(weight, ((0, Kp - K), (0, Np - N))))
    b32 = bias.astype(jnp.float32)
    bp = (b32 if Np == N else jnp.pad(b32, ((0, Np - N),))).reshape(1, Np)

    gm, gn, gk = Mp // bm, Np // bn, Kp // bk

    # --- grid spec ------------------------------------------------------------
    if not multi_k:
        grid = (gm, gn)
        kernel = _linear_bias_kernel
        in_specs = [
            pl.BlockSpec((bm, bk), lambda i, j: (i, 0)),
            pl.BlockSpec((bk, bn), lambda i, j: (0, j)),
            pl.BlockSpec((1, bn), lambda i, j: (0, j)),
        ]
        out_specs = pl.BlockSpec((bm, bn), lambda i, j: (i, j))
        scratch = []
        dims = ("parallel", "parallel")
    else:
        grid = (gm, gn, gk)
        kernel = _linear_bias_acc_kernel
        w_idx = lambda i, j, k: (k, j)
        w_spec = pl.BlockSpec((bk, bn), w_idx)
        if w_bufs == 3:
            try:  # deeper pipeline for skinny-M accumulating cases
                w_spec = pl.BlockSpec((bk, bn), w_idx,
                                      pipeline_mode=pl.Buffered(3))
            except TypeError:
                pass
        in_specs = [
            pl.BlockSpec((bm, bk), lambda i, j, k: (i, k)),
            w_spec,
            pl.BlockSpec((1, bn), lambda i, j, k: (0, j)),
        ]
        out_specs = pl.BlockSpec((bm, bn), lambda i, j, k: (i, j))
        scratch = [pltpu.VMEM((bm, bn), jnp.float32)]
        dims = ("parallel", "parallel", "arbitrary")

    vmem_limit = min(max(int(1.25 * vmem_needed), 16 * 1024 * 1024), budget)
    vmem_limit = int(max(vmem_limit, vmem_needed))

    cost = pl.CostEstimate(
        flops=2 * Mp * Np * Kp,
        transcendentals=0,
        bytes_accessed=(gn * Mp * Kp * cs + gm * Kp * Np * cs
                        + Mp * Np * os_ + gm * Np * 4))

    mu_padded = pl.pallas_call(
        kernel,
        out_shape=jax.ShapeDtypeStruct((Mp, Np), out_dtype),
        grid_spec=pltpu.PrefetchScalarGridSpec(
            num_scalar_prefetch=0,
            grid=grid,
            in_specs=in_specs,
            out_specs=out_specs,
            scratch_shapes=scratch),
        compiler_params=pltpu.CompilerParams(
            dimension_semantics=dims,
            vmem_limit_bytes=vmem_limit),
        cost_estimate=cost,
    )(xp, wp, bp)

    loc = mu_padded if (Mp == B and Np == N) else mu_padded[:B, :N]
    # TODO(synk): torch.distributions.Normal has no Pallas equivalent; the
    # distribution is represented by (loc, scale=1.0).
    return loc, jnp.float32(1.0)


if __name__ == "__main__":
    key = jax.random.PRNGKey(0)

    def _make_problem(key, B, in_features, out_features):
        kx, kw, kb = jax.random.split(key, 3)
        bound = 1.0 / jnp.sqrt(in_features)
        x = jax.random.normal(kx, (B, in_features), dtype=jnp.float32)
        w = jax.random.uniform(kw, (in_features, out_features),
                               minval=-bound, maxval=bound, dtype=jnp.float32)
        b = jax.random.uniform(kb, (out_features,),
                               minval=-bound, maxval=bound, dtype=jnp.float32)
        return x, w, b

    k1, k2, k3 = jax.random.split(key, 3)

    # Case 1: DistributionLayer.from_dense-scale shapes (B=8, in=64, out=32)
    # -> tiny-problem fast path (XLA fused dot).
    x, w, b = _make_problem(k1, 8, 64, 32)
    loc, scale = normal_unit_variance_layer(x, w, b)
    loc = jax.block_until_ready(loc)
    ref = x @ w + b
    assert loc.shape == (8, 32)
    assert jnp.allclose(loc, ref, atol=1e-5, rtol=1e-5)
    assert float(scale) == 1.0

    # Case 1b: same tiny shapes forced through the Pallas single-K-step path
    # (f32 compute -> exact check), exercising M/N/K padding + output slicing.
    loc1b, _ = normal_unit_variance_layer(
        x, w, b, compute_dtype=jnp.float32, force_pallas=True)
    loc1b = jax.block_until_ready(loc1b)
    assert loc1b.shape == (8, 32)
    assert jnp.allclose(loc1b, ref, atol=1e-5, rtol=1e-5)

    # Case 2: multi-tile (M, N, K) accumulator path with ragged padding,
    # f32 compute for a tight reference check.
    x2, w2, b2 = _make_problem(k2, 40, 320, 160)
    loc2, scale2 = normal_unit_variance_layer(
        x2, w2, b2, block_m=16, block_n=128, block_k=128,
        compute_dtype=jnp.float32, force_pallas=True)
    loc2 = jax.block_until_ready(loc2)
    ref2 = x2 @ w2 + b2
    assert loc2.shape == (40, 160)
    assert jnp.allclose(loc2, ref2, atol=1e-4, rtol=1e-4)
    assert float(scale2) == 1.0

    # Case 3: default path (bf16 operands, f32 accumulation, collapsed K,
    # >=2 parallel blocks for the 2-TensorCore split).
    x3, w3, b3 = _make_problem(k3, 256, 512, 512)
    loc3, _ = normal_unit_variance_layer(x3, w3, b3)
    loc3 = jax.block_until_ready(loc3)
    ref3 = x3 @ w3 + b3
    assert loc3.shape == (256, 512)
    assert jnp.allclose(loc3, ref3, atol=2e-2, rtol=2e-2)

    print("KERNEL_OK")
</pallas_src>

<mosaic_0001>
module attributes {stable_mosaic.version = 11 : i64} {
  func.func @_linear_bias_kernel(%arg0: i32, %arg1: i32, %arg2: memref<8x128xf32, #tpu.memory_space<vmem>>, %arg3: memref<128x128xf32, #tpu.memory_space<vmem>>, %arg4: memref<1x128xf32, #tpu.memory_space<vmem>>, %arg5: memref<8x128xf32, #tpu.memory_space<vmem>>) attributes {dimension_semantics = [#tpu.dimension_semantics<parallel>, #tpu.dimension_semantics<parallel>], iteration_bounds = array<i64: 1, 1>, scalar_prefetch = 0 : i64, scratch_operands = 0 : i64, tpu.core_type = #tpu.core_type<tc>, window_params = [{transform_indices = @transform_0, window_bounds = array<i64: 8, 128>}, {transform_indices = @transform_1, window_bounds = array<i64: 128, 128>}, {transform_indices = @transform_2, window_bounds = array<i64: 1, 128>}, {transform_indices = @transform_3, window_bounds = array<i64: 8, 128>}]} {
    %c0 = arith.constant 0 : index
    %c0_0 = arith.constant 0 : index
    %0 = vector.load %arg2[%c0, %c0_0] : memref<8x128xf32, #tpu.memory_space<vmem>>, vector<8x128xf32>
    %c0_1 = arith.constant 0 : index
    %c0_2 = arith.constant 0 : index
    %1 = vector.load %arg3[%c0_1, %c0_2] : memref<128x128xf32, #tpu.memory_space<vmem>>, vector<128x128xf32>
    %cst = arith.constant dense<0.000000e+00> : vector<8x128xf32>
    %2 = tpu.matmul %0, %1, %cst {dimension_numbers = #tpu.dot_dimension_numbers<[1], [0], [0], [1], [0, 0, 1, 1], [], []>} : vector<8x128xf32>, vector<128x128xf32>, vector<8x128xf32> -> vector<8x128xf32>
    %c0_3 = arith.constant 0 : index
    %c0_4 = arith.constant 0 : index
    %3 = vector.load %arg4[%c0_3, %c0_4] : memref<1x128xf32, #tpu.memory_space<vmem>>, vector<1x128xf32>
    %4 = vector.broadcast %3 : vector<1x128xf32> to vector<8x128xf32>
    %5 = arith.addf %2, %4 : vector<8x128xf32>
    %c0_5 = arith.constant 0 : index
    %c0_6 = arith.constant 0 : index
    %6 = vector.load %arg5[%c0_5, %c0_6] : memref<8x128xf32, #tpu.memory_space<vmem>>, vector<8x128xf32>
    tpu.vector_store %arg5[%c0_5, %c0_6], %5 {strides = array<i32>} : memref<8x128xf32, #tpu.memory_space<vmem>>, vector<8x128xf32>,
    return
  }
  func.func @transform_0(%arg0: i32, %arg1: i32) -> (i32, i32) {
    %c0_i32 = arith.constant 0 : i32
    %c0_i32_0 = arith.constant 0 : i32
    return %arg0, %c0_i32 : i32, i32
  }
  func.func @transform_1(%arg0: i32, %arg1: i32) -> (i32, i32) {
    %c0_i32 = arith.constant 0 : i32
    %c0_i32_0 = arith.constant 0 : i32
    return %c0_i32, %arg1 : i32, i32
  }
  func.func @transform_2(%arg0: i32, %arg1: i32) -> (i32, i32) {
    %c0_i32 = arith.constant 0 : i32
    %c0_i32_0 = arith.constant 0 : i32
    return %c0_i32, %arg1 : i32, i32
  }
  func.func @transform_3(%arg0: i32, %arg1: i32) -> (i32, i32) {
    %c0_i32 = arith.constant 0 : i32
    return %arg0, %arg1 : i32, i32
  }
}

</mosaic_0001>

<llo_original>
// kernel: tpu_custom_call.1
$region0: #{tpu_custom_call.1}
  #allocation0 [shape = 'u32[]', space=smem, size = 0x4, offset = 0x4, fixed_abs, tag = 'smem constant byte address 0x4 - core index']
  #allocation1 [shape = 'u32[72,128]{1,0:T(1,128)}', space=vmem, size = 0x9000, scoped, tag = 'internal scratch']
  %s0 = inlined_call_operand.hbm [shape: f32[8,128], index: 0, kind: input, shape index: {}]
  %s1 = inlined_call_operand.hbm [shape: f32[128,128], index: 1, kind: input, shape index: {}]
  %s2 = inlined_call_operand.vmem [shape: f32[1,128], index: 2, kind: input, shape index: {}]
  %s3 = inlined_call_operand.hbm [shape: f32[8,128], index: 3, kind: output, shape index: {}]
  %s4 = sld [smem:[#allocation0]]
  $region30: #{tpu_custom_call.1} parent=0
    _
  %s6 = ssub.s32 1, %s4
  %s7 = scalar_select 0, %s6, %s4
  $region1: #{tpu_custom_call.1} parent=0
    #allocation2 [shape = 'u8[4096]{0}', space=vmem, size = 0x1000, scoped, tag = 'input window, operand 0, single buffered']
    #allocation3 [shape = 's32[1]{0}', space=sflag, size = 0x4, scoped, tag = 'scoped memory for tpu_custom_call.1']
    #allocation4 [shape = 's32[1]{0}', space=sflag, size = 0x4, scoped, tag = 'scoped memory for tpu_custom_call.1']
    #allocation5 [shape = 'u8[65536]{0}', space=vmem, size = 0x10000, scoped, tag = 'input window, operand 1, single buffered']
    #allocation6 [shape = 's32[1]{0}', space=sflag, size = 0x4, scoped, tag = 'scoped memory for tpu_custom_call.1']
    #allocation7 [shape = 'u8[4096]{0}', space=vmem, size = 0x1000, scoped, tag = 'output window, operand 0, single buffered']
    %8 = vsyncpa [#allocation3], 0
    %9 = vsyncpa [#allocation6], 0
    %10 = vsyncpa [#allocation4], 0
    // Predicated region
    $region2: #{tpu_custom_call.1} parent=1 // pred_check
      _
    $region3: #{tpu_custom_call.1} parent=1 // pred_check_branch
      %12 = sbr.rel (0) target = $region5
    $region4: #{tpu_custom_call.1} parent=1 // pred_region
      %14 = vsyncadd [#allocation3], 0
      %s16 = sshll.u32 %s0, 4
      %s17 = int_to_ptr.hbm [resolvable:$true] %s16
      %s18 = sshll.u32 [#allocation2], 4
      %s19 = int_to_ptr.vmem [resolvable:$true] %s18
      %21 = dma.hbm_to_vmem [thread:$0]  %s17, 128, %s19, [#allocation3]
    $region5: #{tpu_custom_call.1} parent=1 // pred_fallthru
      _
    // Predicated region
    $region6: #{tpu_custom_call.1} parent=1 // pred_check
      _
    $region7: #{tpu_custom_call.1} parent=1 // pred_check_branch
      %23 = sbr.rel (0) target = $region9
    $region8: #{tpu_custom_call.1} parent=1 // pred_region
      %25 = vsyncadd [#allocation6], 0
      %s26 = sshll.u32 %s1, 4
      %s27 = int_to_ptr.hbm [resolvable:$true] %s26
      %s28 = sshll.u32 [#allocation5], 4
      %s29 = int_to_ptr.vmem [resolvable:$true] %s28
      %34 = dma.hbm_to_vmem [thread:$0]  %s27, 2048, %s29, [#allocation6], 128, 128, 8
    $region9: #{tpu_custom_call.1} parent=1 // pred_fallthru
      _
    // Predicated region
    $region10: #{tpu_custom_call.1} parent=1 // pred_check
      _
    $region11: #{tpu_custom_call.1} parent=1 // pred_check_branch
      %36 = sbr.rel (0) target = $region13
    $region12: #{tpu_custom_call.1} parent=1 // pred_region
      _
    $region13: #{tpu_custom_call.1} parent=1 // pred_fallthru
      _
    // Predicated region
    $region14: #{tpu_custom_call.1} parent=1 // pred_check
      _
    $region15: #{tpu_custom_call.1} parent=1 // pred_check_branch
      %38 = sbr.rel (0) target = $region17
    $region16: #{tpu_custom_call.1} parent=1 // pred_region
      %40 = dma.done [#allocation3], 128
    $region17: #{tpu_custom_call.1} parent=1 // pred_fallthru
      _
    // Predicated region
    $region18: #{tpu_custom_call.1} parent=1 // pred_check
      _
    $region19: #{tpu_custom_call.1} parent=1 // pred_check_branch
      %42 = sbr.rel (0) target = $region21
    $region20: #{tpu_custom_call.1} parent=1 // pred_region
      %44 = dma.done [#allocation6], 2048
    $region21: #{tpu_custom_call.1} parent=1 // pred_fallthru
      _
    %v45 = vld [vmem:[#allocation2] sm:$0xff]
    %v46 = vld [vmem:[#allocation5] sm:$0xff]
    %v47 = vld [vmem:[#allocation5 + $0x8] sm:$0xff]
    %v48 = vld [vmem:[#allocation5 + $0x10] sm:$0xff]
    %v49 = vld [vmem:[#allocation5 + $0x18] sm:$0xff]
    %v50 = vld [vmem:[#allocation5 + $0x20] sm:$0xff]
    %v51 = vld [vmem:[#allocation5 + $0x28] sm:$0xff]
    %v52 = vld [vmem:[#allocation5 + $0x30] sm:$0xff]
    %v53 = vld [vmem:[#allocation5 + $0x38] sm:$0xff]
    %v54 = vld [vmem:[#allocation5 + $0x40] sm:$0xff]
    %v55 = vld [vmem:[#allocation5 + $0x48] sm:$0xff]
    %v56 = vld [vmem:[#allocation5 + $0x50] sm:$0xff]
    %v57 = vld [vmem:[#allocation5 + $0x58] sm:$0xff]
    %v58 = vld [vmem:[#allocation5 + $0x60] sm:$0xff]
    %v59 = vld [vmem:[#allocation5 + $0x68] sm:$0xff]
    %v60 = vld [vmem:[#allocation5 + $0x70] sm:$0xff]
    %v61 = vld [vmem:[#allocation5 + $0x78] sm:$0xff]
    %v62 = vld [vmem:[%s2] sm:$0x1]
    %v64 = vperm.slane %v62, 0
    %66 = vmatpush.msra.mxu0 %v61
    %67 = vmatpush.msra.mxu0 %v60
    %68 = vmatpush.msra.mxu0 %v59
    %69 = vmatpush.msra.mxu0 %v58
    %70 = vmatpush.msra.mxu0 %v57
    %71 = vmatpush.msra.mxu0 %v56
    %72 = vmatpush.msra.mxu0 %v55
    %73 = vmatpush.msra.mxu0 %v54
    %74 = vmatpush.msra.mxu0 %v53
    %75 = vmatpush.msra.mxu0 %v52
    %76 = vmatpush.msra.mxu0 %v51
    %77 = vmatpush.msra.mxu0 %v50
    %78 = vmatpush.msra.mxu0 %v49
    %79 = vmatpush.msra.mxu0 %v48
    %80 = vmatpush.msra.mxu0 %v47
    %81 = vmatpush.msra.mxu0 %v46
    %82 = vmatmul.f32.gmra.mxu0 %v45
    %v83 = vpop.f32.mrf.mxu0
    %v84 = vadd.f32 %v64, %v83
    %85 = vdwg.mxu0
    %86 = vst [vmem:[#allocation7] sm:$0xff] %v84
    // Predicated region
    $region22: #{tpu_custom_call.1} parent=1 // pred_check
      _
    $region23: #{tpu_custom_call.1} parent=1 // pred_check_branch
      %88 = sbr.rel (0) target = $region25
    $region24: #{tpu_custom_call.1} parent=1 // pred_region
      %90 = vsyncadd [#allocation4], 0
      %s92 = sshll.u32 [#allocation7], 4
      %s93 = int_to_ptr.vmem [resolvable:$true] %s92
      %s94 = sshll.u32 %s3, 4
      %s95 = int_to_ptr.hbm [resolvable:$true] %s94
      %97 = dma.vmem_to_hbm [thread:$0]  %s93, 128, %s95, [#allocation4]
    $region25: #{tpu_custom_call.1} parent=1 // pred_fallthru
      _
    // Predicated region
    $region26: #{tpu_custom_call.1} parent=1 // pred_check
      _
    $region27: #{tpu_custom_call.1} parent=1 // pred_check_branch
      %99 = sbr.rel (0) target = $region29
    $region28: #{tpu_custom_call.1} parent=1 // pred_region
      %101 = dma.done [#allocation4], 128
    $region29: #{tpu_custom_call.1} parent=1 // pred_fallthru
      _
    %102 = vsyncpa [#allocation3], 1
    %103 = vsyncpa [#allocation6], 1
    %104 = vsyncpa [#allocation4], 1

</llo_original>
